<compile_context>
chip_gen: v6e
topology: v6e:2x2x1
jax: 0.10.0
libtpu: 0.0.40
codegen_flags: <defaults>
</compile_context>

<pallas_src>
import math

import jax
import jax.numpy as jnp
from jax import lax
from jax.experimental import pallas as pl
from jax.experimental.pallas import tpu as pltpu


def _attention_body(x, kvx, wq_ref, wk_ref, wv_ref, wfc_ref, o_ref, *,
                    n_heads, dim_attn, dim_val, compute_dtype):
    """Shared fused-MHA body. x: [S, dv], kvx: [S_kv, dv] (compute_dtype)."""
    # Fused Q/K/V projections over head-concatenated weights (one MXU matmul
    # each, contraction dv=32, output lanes H*da=64 / H*dv=128).
    q = jnp.dot(x, wq_ref[...], preferred_element_type=jnp.float32)    # [S,   H*da]
    k = jnp.dot(kvx, wk_ref[...], preferred_element_type=jnp.float32)  # [Skv, H*da]
    v = jnp.dot(kvx, wv_ref[...], preferred_element_type=jnp.float32)  # [Skv, H*dv]
    q = q.astype(compute_dtype)
    k = k.astype(compute_dtype)
    v = v.astype(compute_dtype)

    approx = compute_dtype != jnp.float32  # exact reciprocal on the f32 path
    heads = []
    for h in range(n_heads):  # static unroll; static lane slices
        q_h = q[:, h * dim_attn:(h + 1) * dim_attn]
        k_h = k[:, h * dim_attn:(h + 1) * dim_attn]
        v_h = v[:, h * dim_val:(h + 1) * dim_val]
        # Contract last dim of both operands -> no in-kernel k.T / XLU vxpose.
        s = lax.dot_general(q_h, k_h, (((1,), (1,)), ((), ())),
                            preferred_element_type=jnp.float32)        # [S, Skv] f32
        # Softmax kept in f32; the 1/sqrt(da) scale is already folded into Wq.
        m = jnp.max(s, axis=-1, keepdims=True)
        p = jnp.exp(s - m)
        l = jnp.sum(p, axis=-1, keepdims=True)
        head = jnp.dot(p.astype(compute_dtype), v_h,
                       preferred_element_type=jnp.float32)              # [S, dv] f32
        # Deferred normalization on the small [S, dv] tile (EUP reciprocal).
        heads.append(head * pl.reciprocal(l, approx=approx))
    # Lane-dense [S, H*dv] slab (128 lanes) -> single output matmul, K = H*dv.
    a = jnp.concatenate(heads, axis=-1)
    out = jnp.dot(a.astype(compute_dtype), wfc_ref[...],
                  preferred_element_type=jnp.float32)                   # [S, dv]
    o_ref[0] = out.astype(o_ref.dtype)


def prepare_params(wq, wk, wv, fc_w, compute_dtype=jnp.bfloat16):
    """One-time parameter transform (do at load time, NOT per forward call).

    wq, wk : [H, dim_val, dim_attn]   per-head nn.Linear weights (y = x @ W)
    wv     : [H, dim_val, dim_val]
    fc_w   : [dim_val, H*dim_val]     PyTorch nn.Linear weight (y = a @ fc_w.T)
    """
    H, dv, da = wq.shape
    scale = 1.0 / math.sqrt(float(da))
    # Head-concatenated projection weights; fold 1/sqrt(da) into Wq (in f32).
    wq_cat = (jnp.transpose(wq, (1, 0, 2)) * scale).reshape(dv, H * da)
    wk_cat = jnp.transpose(wk, (1, 0, 2)).reshape(dv, H * da)
    wv_cat = jnp.transpose(wv, (1, 0, 2)).reshape(dv, H * dv)
    # PyTorch stack(dim=-1).flatten(2) interleaves columns as v*H + h; re-lay
    # to the head-major [h*dv + v] row order the kernel's concat produces.
    wfc = jnp.transpose(fc_w.reshape(dv, dv, H), (2, 1, 0)).reshape(H * dv, dv)
    c = lambda w: w.astype(compute_dtype)
    return c(wq_cat), c(wk_cat), c(wv_cat), c(wfc)


def multi_head_attention_block(x, params, *, n_heads, dim_attn, kv=None):
    """x: [B, S, dim_val]; params from prepare_params(); kv: [B, S_kv, dim_val] or None."""
    wq_cat, wk_cat, wv_cat, wfc = params
    compute_dtype = wq_cat.dtype
    B, S, dv = x.shape
    H, da = n_heads, dim_attn
    x_c = x.astype(compute_dtype)

    body_kw = dict(n_heads=H, dim_attn=da, dim_val=dv, compute_dtype=compute_dtype)
    # Constant index_maps -> weights DMA'd once and kept VMEM-resident.
    w_spec = lambda arr: pl.BlockSpec(arr.shape, lambda b: (0, 0))
    act_spec = lambda s_len: pl.BlockSpec((1, s_len, dv), lambda b: (b, 0, 0))

    itemsize = jnp.dtype(compute_dtype).itemsize
    w_bytes = sum(int(w.size) * itemsize for w in params)

    if kv is None:
        # Self-attention: single activation operand, no duplicate x DMA.
        S_kv = S

        def kernel(x_ref, wq_ref, wk_ref, wv_ref, wfc_ref, o_ref):
            xb = x_ref[0]
            _attention_body(xb, xb, wq_ref, wk_ref, wv_ref, wfc_ref, o_ref,
                            **body_kw)

        in_specs = [act_spec(S), w_spec(wq_cat), w_spec(wk_cat),
                    w_spec(wv_cat), w_spec(wfc)]
        operands = (x_c, wq_cat, wk_cat, wv_cat, wfc)
        act_bytes = int(x_c.size) * itemsize
    else:
        S_kv = kv.shape[1]
        kv_c = kv.astype(compute_dtype)

        def kernel(x_ref, kv_ref, wq_ref, wk_ref, wv_ref, wfc_ref, o_ref):
            _attention_body(x_ref[0], kv_ref[0], wq_ref, wk_ref, wv_ref,
                            wfc_ref, o_ref, **body_kw)

        in_specs = [act_spec(S), act_spec(S_kv), w_spec(wq_cat),
                    w_spec(wk_cat), w_spec(wv_cat), w_spec(wfc)]
        operands = (x_c, kv_c, wq_cat, wk_cat, wv_cat, wfc)
        act_bytes = (int(x_c.size) + int(kv_c.size)) * itemsize

    flops = 2 * B * (S * dv * H * da + S_kv * dv * H * da + S_kv * dv * H * dv
                     + H * S * S_kv * da + H * S * S_kv * dv + S * H * dv * dv)
    transcendentals = B * H * S * (S_kv + 1)
    bytes_accessed = act_bytes + w_bytes + B * S * dv * 4

    out = pl.pallas_call(
        kernel,
        out_shape=jax.ShapeDtypeStruct((B, S, dv), jnp.float32),
        grid_spec=pltpu.PrefetchScalarGridSpec(
            num_scalar_prefetch=0,
            grid=(B,),                      # heads fused in-kernel: batch-only grid
            in_specs=in_specs,
            out_specs=act_spec(S)),
        compiler_params=pltpu.CompilerParams(
            dimension_semantics=("parallel",)),   # megacore / v7x 2-TC sharding
        cost_estimate=pl.CostEstimate(flops=int(flops),
                                      transcendentals=int(transcendentals),
                                      bytes_accessed=int(bytes_accessed)),
    )(*operands)
    return out


def reference(x, wq, wk, wv, fc_w, kv=None):
    """Pure-JAX f32 mirror of the PyTorch forward, for verification."""
    if kv is None:
        kv = x
    H, dv, da = wq.shape
    heads = []
    for h in range(H):
        q = x @ wq[h]
        k = kv @ wk[h]
        v = kv @ wv[h]
        s = (q @ jnp.swapaxes(k, 1, 2)) / jnp.sqrt(jnp.float32(da))
        p = jax.nn.softmax(s, axis=-1)
        heads.append(p @ v)
    a = jnp.stack(heads, axis=-1)                  # [B, S, dv, H]
    a = a.reshape(a.shape[0], a.shape[1], -1)      # [B, S, dv*H] (v*H + h order)
    return a @ fc_w.T


if __name__ == "__main__":
    B, S, S_kv, dim_val, dim_attn, n_heads = 2, 8, 16, 32, 16, 4

    key = jax.random.PRNGKey(0)
    kx, kkv, kq, kk, kv_, kf = jax.random.split(key, 6)

    x = jax.random.normal(kx, (B, S, dim_val), dtype=jnp.float32)
    kv_in = jax.random.normal(kkv, (B, S_kv, dim_val), dtype=jnp.float32)
    wq = 0.1 * jax.random.normal(kq, (n_heads, dim_val, dim_attn), jnp.float32)
    wk = 0.1 * jax.random.normal(kk, (n_heads, dim_val, dim_attn), jnp.float32)
    wv = 0.1 * jax.random.normal(kv_, (n_heads, dim_val, dim_val), jnp.float32)
    fc_w = 0.1 * jax.random.normal(kf, (dim_val, n_heads * dim_val), jnp.float32)

    ref_self = reference(x, wq, wk, wv, fc_w, kv=None)
    ref_cross = reference(x, wq, wk, wv, fc_w, kv=kv_in)

    # f32 compute path: exact-semantics check.
    params_f32 = prepare_params(wq, wk, wv, fc_w, compute_dtype=jnp.float32)
    out_self = multi_head_attention_block(x, params_f32, n_heads=n_heads,
                                          dim_attn=dim_attn)
    out_self = jax.block_until_ready(out_self)
    assert out_self.shape == (B, S, dim_val)
    assert jnp.allclose(out_self, ref_self, atol=2e-3, rtol=2e-3), \
        "self-attn (f32) mismatch vs reference"

    out_cross = multi_head_attention_block(x, params_f32, n_heads=n_heads,
                                           dim_attn=dim_attn, kv=kv_in)
    out_cross = jax.block_until_ready(out_cross)
    assert jnp.allclose(out_cross, ref_cross, atol=2e-3, rtol=2e-3), \
        "cross-attn (f32) mismatch vs reference"

    # bf16 MXU fast path (v6e/v7x feedback): looser tolerance vs f32 reference.
    params_bf16 = prepare_params(wq, wk, wv, fc_w, compute_dtype=jnp.bfloat16)
    out_bf16 = multi_head_attention_block(x, params_bf16, n_heads=n_heads,
                                          dim_attn=dim_attn)
    out_bf16 = jax.block_until_ready(out_bf16)
    assert jnp.allclose(out_bf16, ref_self, atol=7.5e-2, rtol=7.5e-2), \
        "self-attn (bf16) mismatch vs reference"

    print("KERNEL_OK")
</pallas_src>

<mosaic_0001>
module attributes {stable_mosaic.version = 11 : i64} {
  func.func @kernel(%arg0: i32, %arg1: memref<1x8x32xf32, #tpu.memory_space<vmem>>, %arg2: memref<32x64xf32, #tpu.memory_space<vmem>>, %arg3: memref<32x64xf32, #tpu.memory_space<vmem>>, %arg4: memref<32x128xf32, #tpu.memory_space<vmem>>, %arg5: memref<128x32xf32, #tpu.memory_space<vmem>>, %arg6: memref<1x8x32xf32, #tpu.memory_space<vmem>>) attributes {dimension_semantics = [#tpu.dimension_semantics<parallel>], iteration_bounds = array<i64: 2>, scalar_prefetch = 0 : i64, scratch_operands = 0 : i64, tpu.core_type = #tpu.core_type<tc>, window_params = [{transform_indices = @transform_0, window_bounds = array<i64: 1, 8, 32>}, {pipeline_mode = #tpu.pipeline_mode<synchronous>, transform_indices = @transform_1, window_bounds = array<i64: 32, 64>}, {pipeline_mode = #tpu.pipeline_mode<synchronous>, transform_indices = @transform_2, window_bounds = array<i64: 32, 64>}, {pipeline_mode = #tpu.pipeline_mode<synchronous>, transform_indices = @transform_3, window_bounds = array<i64: 32, 128>}, {pipeline_mode = #tpu.pipeline_mode<synchronous>, transform_indices = @transform_4, window_bounds = array<i64: 128, 32>}, {transform_indices = @transform_5, window_bounds = array<i64: 1, 8, 32>}]} {
    %c0 = arith.constant 0 : index
    %c0_0 = arith.constant 0 : index
    %c0_1 = arith.constant 0 : index
    %0 = vector.load %arg1[%c0, %c0_0, %c0_1] : memref<1x8x32xf32, #tpu.memory_space<vmem>>, vector<1x8x32xf32>
    %1 = vector.shape_cast %0 : vector<1x8x32xf32> to vector<8x32xf32>
    %c0_2 = arith.constant 0 : index
    %c0_3 = arith.constant 0 : index
    %2 = vector.load %arg2[%c0_2, %c0_3] : memref<32x64xf32, #tpu.memory_space<vmem>>, vector<32x64xf32>
    %cst = arith.constant dense<0.000000e+00> : vector<8x64xf32>
    %3 = tpu.matmul %1, %2, %cst {dimension_numbers = #tpu.dot_dimension_numbers<[1], [0], [0], [1], [0, 0, 1, 1], [], []>} : vector<8x32xf32>, vector<32x64xf32>, vector<8x64xf32> -> vector<8x64xf32>
    %c0_4 = arith.constant 0 : index
    %c0_5 = arith.constant 0 : index
    %4 = vector.load %arg3[%c0_4, %c0_5] : memref<32x64xf32, #tpu.memory_space<vmem>>, vector<32x64xf32>
    %cst_6 = arith.constant dense<0.000000e+00> : vector<8x64xf32>
    %5 = tpu.matmul %1, %4, %cst_6 {dimension_numbers = #tpu.dot_dimension_numbers<[1], [0], [0], [1], [0, 0, 1, 1], [], []>} : vector<8x32xf32>, vector<32x64xf32>, vector<8x64xf32> -> vector<8x64xf32>
    %c0_7 = arith.constant 0 : index
    %c0_8 = arith.constant 0 : index
    %6 = vector.load %arg4[%c0_7, %c0_8] : memref<32x128xf32, #tpu.memory_space<vmem>>, vector<32x128xf32>
    %cst_9 = arith.constant dense<0.000000e+00> : vector<8x128xf32>
    %7 = tpu.matmul %1, %6, %cst_9 {dimension_numbers = #tpu.dot_dimension_numbers<[1], [0], [0], [1], [0, 0, 1, 1], [], []>} : vector<8x32xf32>, vector<32x128xf32>, vector<8x128xf32> -> vector<8x128xf32>
    %8 = vector.extract_strided_slice %3 {offsets = [0, 0], sizes = [8, 16], strides = [1, 1]} : vector<8x64xf32> to vector<8x16xf32>
    %9 = vector.extract_strided_slice %5 {offsets = [0, 0], sizes = [8, 16], strides = [1, 1]} : vector<8x64xf32> to vector<8x16xf32>
    %10 = vector.extract_strided_slice %7 {offsets = [0, 0], sizes = [8, 32], strides = [1, 1]} : vector<8x128xf32> to vector<8x32xf32>
    %cst_10 = arith.constant dense<0.000000e+00> : vector<8x8xf32>
    %11 = tpu.matmul %8, %9, %cst_10 {dimension_numbers = #tpu.dot_dimension_numbers<[1], [1], [0], [0], [0, 0, 1, 0], [], []>} : vector<8x16xf32>, vector<8x16xf32>, vector<8x8xf32> -> vector<8x8xf32>
    %cst_11 = arith.constant dense<0xFF800000> : vector<8xf32>
    %12 = vector.multi_reduction <maximumf>, %11, %cst_11 [1] : vector<8x8xf32> to vector<8xf32>
    %13 = vector.shape_cast %12 : vector<8xf32> to vector<8x1xf32>
    %14 = vector.broadcast %13 : vector<8x1xf32> to vector<8x8xf32>
    %15 = arith.subf %11, %14 : vector<8x8xf32>
    %16 = math.exp %15 : vector<8x8xf32>
    %cst_12 = arith.constant dense<0.000000e+00> : vector<8xf32>
    %17 = vector.multi_reduction <add>, %16, %cst_12 [1] : vector<8x8xf32> to vector<8xf32>
    %18 = vector.shape_cast %17 : vector<8xf32> to vector<8x1xf32>
    %cst_13 = arith.constant dense<0.000000e+00> : vector<8x32xf32>
    %19 = tpu.matmul %16, %10, %cst_13 {dimension_numbers = #tpu.dot_dimension_numbers<[1], [0], [0], [1], [0, 0, 1, 1], [], []>} : vector<8x8xf32>, vector<8x32xf32>, vector<8x32xf32> -> vector<8x32xf32>
    %20 = tpu.reciprocal %18 : vector<8x1xf32> -> vector<8x1xf32>
    %21 = vector.broadcast %20 : vector<8x1xf32> to vector<8x32xf32>
    %22 = arith.mulf %19, %21 : vector<8x32xf32>
    %23 = vector.extract_strided_slice %3 {offsets = [0, 16], sizes = [8, 16], strides = [1, 1]} : vector<8x64xf32> to vector<8x16xf32>
    %24 = vector.extract_strided_slice %5 {offsets = [0, 16], sizes = [8, 16], strides = [1, 1]} : vector<8x64xf32> to vector<8x16xf32>
    %25 = vector.extract_strided_slice %7 {offsets = [0, 32], sizes = [8, 32], strides = [1, 1]} : vector<8x128xf32> to vector<8x32xf32>
    %cst_14 = arith.constant dense<0.000000e+00> : vector<8x8xf32>
    %26 = tpu.matmul %23, %24, %cst_14 {dimension_numbers = #tpu.dot_dimension_numbers<[1], [1], [0], [0], [0, 0, 1, 0], [], []>} : vector<8x16xf32>, vector<8x16xf32>, vector<8x8xf32> -> vector<8x8xf32>
    %cst_15 = arith.constant dense<0xFF800000> : vector<8xf32>
    %27 = vector.multi_reduction <maximumf>, %26, %cst_15 [1] : vector<8x8xf32> to vector<8xf32>
    %28 = vector.shape_cast %27 : vector<8xf32> to vector<8x1xf32>
    %29 = vector.broadcast %28 : vector<8x1xf32> to vector<8x8xf32>
    %30 = arith.subf %26, %29 : vector<8x8xf32>
    %31 = math.exp %30 : vector<8x8xf32>
    %cst_16 = arith.constant dense<0.000000e+00> : vector<8xf32>
    %32 = vector.multi_reduction <add>, %31, %cst_16 [1] : vector<8x8xf32> to vector<8xf32>
    %33 = vector.shape_cast %32 : vector<8xf32> to vector<8x1xf32>
    %cst_17 = arith.constant dense<0.000000e+00> : vector<8x32xf32>
    %34 = tpu.matmul %31, %25, %cst_17 {dimension_numbers = #tpu.dot_dimension_numbers<[1], [0], [0], [1], [0, 0, 1, 1], [], []>} : vector<8x8xf32>, vector<8x32xf32>, vector<8x32xf32> -> vector<8x32xf32>
    %35 = tpu.reciprocal %33 : vector<8x1xf32> -> vector<8x1xf32>
    %36 = vector.broadcast %35 : vector<8x1xf32> to vector<8x32xf32>
    %37 = arith.mulf %34, %36 : vector<8x32xf32>
    %38 = vector.extract_strided_slice %3 {offsets = [0, 32], sizes = [8, 16], strides = [1, 1]} : vector<8x64xf32> to vector<8x16xf32>
    %39 = vector.extract_strided_slice %5 {offsets = [0, 32], sizes = [8, 16], strides = [1, 1]} : vector<8x64xf32> to vector<8x16xf32>
    %40 = vector.extract_strided_slice %7 {offsets = [0, 64], sizes = [8, 32], strides = [1, 1]} : vector<8x128xf32> to vector<8x32xf32>
    %cst_18 = arith.constant dense<0.000000e+00> : vector<8x8xf32>
    %41 = tpu.matmul %38, %39, %cst_18 {dimension_numbers = #tpu.dot_dimension_numbers<[1], [1], [0], [0], [0, 0, 1, 0], [], []>} : vector<8x16xf32>, vector<8x16xf32>, vector<8x8xf32> -> vector<8x8xf32>
    %cst_19 = arith.constant dense<0xFF800000> : vector<8xf32>
    %42 = vector.multi_reduction <maximumf>, %41, %cst_19 [1] : vector<8x8xf32> to vector<8xf32>
    %43 = vector.shape_cast %42 : vector<8xf32> to vector<8x1xf32>
    %44 = vector.broadcast %43 : vector<8x1xf32> to vector<8x8xf32>
    %45 = arith.subf %41, %44 : vector<8x8xf32>
    %46 = math.exp %45 : vector<8x8xf32>
    %cst_20 = arith.constant dense<0.000000e+00> : vector<8xf32>
    %47 = vector.multi_reduction <add>, %46, %cst_20 [1] : vector<8x8xf32> to vector<8xf32>
    %48 = vector.shape_cast %47 : vector<8xf32> to vector<8x1xf32>
    %cst_21 = arith.constant dense<0.000000e+00> : vector<8x32xf32>
    %49 = tpu.matmul %46, %40, %cst_21 {dimension_numbers = #tpu.dot_dimension_numbers<[1], [0], [0], [1], [0, 0, 1, 1], [], []>} : vector<8x8xf32>, vector<8x32xf32>, vector<8x32xf32> -> vector<8x32xf32>
    %50 = tpu.reciprocal %48 : vector<8x1xf32> -> vector<8x1xf32>
    %51 = vector.broadcast %50 : vector<8x1xf32> to vector<8x32xf32>
    %52 = arith.mulf %49, %51 : vector<8x32xf32>
    %53 = vector.extract_strided_slice %3 {offsets = [0, 48], sizes = [8, 16], strides = [1, 1]} : vector<8x64xf32> to vector<8x16xf32>
    %54 = vector.extract_strided_slice %5 {offsets = [0, 48], sizes = [8, 16], strides = [1, 1]} : vector<8x64xf32> to vector<8x16xf32>
    %55 = vector.extract_strided_slice %7 {offsets = [0, 96], sizes = [8, 32], strides = [1, 1]} : vector<8x128xf32> to vector<8x32xf32>
    %cst_22 = arith.constant dense<0.000000e+00> : vector<8x8xf32>
    %56 = tpu.matmul %53, %54, %cst_22 {dimension_numbers = #tpu.dot_dimension_numbers<[1], [1], [0], [0], [0, 0, 1, 0], [], []>} : vector<8x16xf32>, vector<8x16xf32>, vector<8x8xf32> -> vector<8x8xf32>
    %cst_23 = arith.constant dense<0xFF800000> : vector<8xf32>
    %57 = vector.multi_reduction <maximumf>, %56, %cst_23 [1] : vector<8x8xf32> to vector<8xf32>
    %58 = vector.shape_cast %57 : vector<8xf32> to vector<8x1xf32>
    %59 = vector.broadcast %58 : vector<8x1xf32> to vector<8x8xf32>
    %60 = arith.subf %56, %59 : vector<8x8xf32>
    %61 = math.exp %60 : vector<8x8xf32>
    %cst_24 = arith.constant dense<0.000000e+00> : vector<8xf32>
    %62 = vector.multi_reduction <add>, %61, %cst_24 [1] : vector<8x8xf32> to vector<8xf32>
    %63 = vector.shape_cast %62 : vector<8xf32> to vector<8x1xf32>
    %cst_25 = arith.constant dense<0.000000e+00> : vector<8x32xf32>
    %64 = tpu.matmul %61, %55, %cst_25 {dimension_numbers = #tpu.dot_dimension_numbers<[1], [0], [0], [1], [0, 0, 1, 1], [], []>} : vector<8x8xf32>, vector<8x32xf32>, vector<8x32xf32> -> vector<8x32xf32>
    %65 = tpu.reciprocal %63 : vector<8x1xf32> -> vector<8x1xf32>
    %66 = vector.broadcast %65 : vector<8x1xf32> to vector<8x32xf32>
    %67 = arith.mulf %64, %66 : vector<8x32xf32>
    %68 = tpu.concatenate %22, %37, %52, %67 in 1 : vector<8x32xf32>, vector<8x32xf32>, vector<8x32xf32>, vector<8x32xf32> -> vector<8x128xf32>
    %c0_26 = arith.constant 0 : index
    %c0_27 = arith.constant 0 : index
    %69 = vector.load %arg5[%c0_26, %c0_27] : memref<128x32xf32, #tpu.memory_space<vmem>>, vector<128x32xf32>
    %cst_28 = arith.constant dense<0.000000e+00> : vector<8x32xf32>
    %70 = tpu.matmul %68, %69, %cst_28 {dimension_numbers = #tpu.dot_dimension_numbers<[1], [0], [0], [1], [0, 0, 1, 1], [], []>} : vector<8x128xf32>, vector<128x32xf32>, vector<8x32xf32> -> vector<8x32xf32>
    %c0_29 = arith.constant 0 : index
    %c0_30 = arith.constant 0 : index
    %c0_31 = arith.constant 0 : index
    %71 = vector.load %arg6[%c0_29, %c0_30, %c0_31] : memref<1x8x32xf32, #tpu.memory_space<vmem>>, vector<1x8x32xf32>
    %72 = vector.shape_cast %71 : vector<1x8x32xf32> to vector<8x32xf32>
    %73 = vector.shape_cast %70 : vector<8x32xf32> to vector<1x8x32xf32>
    tpu.vector_store %arg6[%c0_29, %c0_30, %c0_31], %73 {strides = array<i32>} : memref<1x8x32xf32, #tpu.memory_space<vmem>>, vector<1x8x32xf32>,
    return
  }
  func.func @transform_0(%arg0: i32) -> (i32, i32, i32) {
    %c0_i32 = arith.constant 0 : i32
    %c0_i32_0 = arith.constant 0 : i32
    %c0_i32_1 = arith.constant 0 : i32
    return %arg0, %c0_i32, %c0_i32_0 : i32, i32, i32
  }
  func.func @transform_1(%arg0: i32) -> (i32, i32) {
    %c0_i32 = arith.constant 0 : i32
    %c0_i32_0 = arith.constant 0 : i32
    %c0_i32_1 = arith.constant 0 : i32
    return %c0_i32, %c0_i32_0 : i32, i32
  }
  func.func @transform_2(%arg0: i32) -> (i32, i32) {
    %c0_i32 = arith.constant 0 : i32
    %c0_i32_0 = arith.constant 0 : i32
    %c0_i32_1 = arith.constant 0 : i32
    return %c0_i32, %c0_i32_0 : i32, i32
  }
  func.func @transform_3(%arg0: i32) -> (i32, i32) {
    %c0_i32 = arith.constant 0 : i32
    %c0_i32_0 = arith.constant 0 : i32
    %c0_i32_1 = arith.constant 0 : i32
    return %c0_i32, %c0_i32_0 : i32, i32
  }
  func.func @transform_4(%arg0: i32) -> (i32, i32) {
    %c0_i32 = arith.constant 0 : i32
    %c0_i32_0 = arith.constant 0 : i32
    %c0_i32_1 = arith.constant 0 : i32
    return %c0_i32, %c0_i32_0 : i32, i32
  }
  func.func @transform_5(%arg0: i32) -> (i32, i32, i32) {
    %c0_i32 = arith.constant 0 : i32
    %c0_i32_0 = arith.constant 0 : i32
    %c0_i32_1 = arith.constant 0 : i32
    return %arg0, %c0_i32, %c0_i32_0 : i32, i32, i32
  }
}

</mosaic_0001>

<llo_original>
// kernel: tpu_custom_call.1
$region0: #{tpu_custom_call.1}
  #allocation0 [shape = 'u32[]', space=smem, size = 0x4, offset = 0x4, fixed_abs, tag = 'smem constant byte address 0x4 - core index']
  #allocation1 [shape = 'u32[144,128]{1,0:T(1,128)}', space=vmem, size = 0x12000, scoped, tag = 'internal scratch']
  %s0 = inlined_call_operand.vmem [shape: f32[2,8,32], index: 0, kind: input, shape index: {}]
  %s1 = inlined_call_operand.vmem [shape: f32[32,64], index: 1, kind: input, shape index: {}]
  %s2 = inlined_call_operand.vmem [shape: f32[32,64], index: 2, kind: input, shape index: {}]
  %s3 = inlined_call_operand.vmem [shape: f32[32,128], index: 3, kind: input, shape index: {}]
  %s4 = inlined_call_operand.vmem [shape: f32[128,32], index: 4, kind: input, shape index: {}]
  %s5 = inlined_call_operand.hbm [shape: f32[2,8,32], index: 5, kind: output, shape index: {}]
  %s6 = sld [smem:[#allocation0]]
  $region53: #{tpu_custom_call.1} parent=0
    _
  %s8 = ssub.s32 1, %s6
  %s9 = scalar_select 0, %s8, %s6
  $region1: #{tpu_custom_call.1} parent=0
    #allocation2 [shape = 'u8[8192]{0}', space=vmem, size = 0x2000, scoped, tag = 'output window, operand 0']
    #allocation3 [shape = 's32[2]{0}', space=sflag, size = 0x8, scoped, tag = 'scoped memory for tpu_custom_call.1']
    %10 = vsyncpa [#allocation3], 0
    %s11 = scalar_lea.sflag [#allocation3], 1
    %12 = vsyncpa %s11, 0
    loop: start=0, step=1, limit=4
    $region2: #{tpu_custom_call.1} parent=1 // loop_pre_header
      _
    $region3: #{tpu_custom_call.1} parent=1 // loop_header
      %s14 = sphi 0, %s18
      %p15 = scmp.ge.s32.totalorder %s14, 4
      %s24 = sphi 0, %s26
      %s27 = sphi 0, %s24
      %s28 = sphi 0, %s27
      %s44 = sphi 0, %s28
      %s48 = sphi 0, %s48
      %s50 = sphi 0, %s48
      %s51 = sphi 0, %s50
      %s65 = sphi 0, %s51
      %s69 = sphi 0, %s69
      %s71 = sphi 0, %s69
      %s72 = sphi 0, %s71
      %s86 = sphi 0, %s72
      %s90 = sphi 0, %s90
      %s92 = sphi 0, %s90
      %s93 = sphi 0, %s92
      %s107 = sphi 0, %s93
      %s111 = sphi 0, %s111
      %s113 = sphi 0, %s111
      %s114 = sphi 0, %s113
      %s128 = sphi 0, %s114
      %s134 = sphi 0, %s136
      %s137 = sphi 0, %s134
      %s138 = sphi 0, %s137
      %s154 = sphi 0, %s138
    $region4: #{tpu_custom_call.1} parent=1 // loop_header_branch
      %17 = sbr.rel (%p15) target = $region8
    $region5: #{tpu_custom_call.1} parent=1 // loop_body
      %s19 = ssub.s32 %s14, 1
      %s20 = ssub.s32 %s14, 2
      %s21 = sadd.s32 %s14, 1
      %s22 = ssub.s32 %s14, %s21
      %p23 = scmp.eq.s32.totalorder %s22, 0
      %s25 = sadd.s32 %s24, 1
      %s26 = scalar_select %p23, %s24, %s25
      %p29 = pneg %p23
      %p30 = scmp.eq.s32.totalorder %s14, 1
      %p31 = por %p29, %p30
      %p32 = scmp.ne.s32.totalorder %s24, %s27
      %p33 = scmp.eq.s32.totalorder %s14, 0
      %p34 = por %p32, %p33
      %p35 = scmp.ne.s32.totalorder %s24, %s27
      %p36 = scmp.eq.s32.totalorder %s19, 1
      %p37 = por %p35, %p36
      %p38 = scmp.ne.s32.totalorder %s27, %s28
      %p39 = scmp.eq.s32.totalorder %s19, 0
      %p40 = por %p38, %p39
      %p41 = scmp.ne.s32.totalorder %s27, %s28
      %p42 = scmp.eq.s32.totalorder %s20, 1
      %p43 = por %p41, %p42
      %p45 = scmp.ne.s32.totalorder %s28, %s44
      %p46 = scmp.eq.s32.totalorder %s20, 0
      %p47 = por %p45, %p46
      %s49 = sadd.s32 %s48, 1
      %p52 = scmp.eq.s32.totalorder %s14, 1
      %p53 = scmp.ne.s32.totalorder %s48, %s50
      %p54 = scmp.eq.s32.totalorder %s14, 0
      %p55 = por %p53, %p54
      %p56 = scmp.ne.s32.totalorder %s48, %s50
      %p57 = scmp.eq.s32.totalorder %s19, 1
      %p58 = por %p56, %p57
      %p59 = scmp.ne.s32.totalorder %s50, %s51
      %p60 = scmp.eq.s32.totalorder %s19, 0
      %p61 = por %p59, %p60
      %p62 = scmp.ne.s32.totalorder %s50, %s51
      %p63 = scmp.eq.s32.totalorder %s20, 1
      %p64 = por %p62, %p63
      %p66 = scmp.ne.s32.totalorder %s51, %s65
      %p67 = scmp.eq.s32.totalorder %s20, 0
      %p68 = por %p66, %p67
      %s70 = sadd.s32 %s69, 1
      %p73 = scmp.eq.s32.totalorder %s14, 1
      %p74 = scmp.ne.s32.totalorder %s69, %s71
      %p75 = scmp.eq.s32.totalorder %s14, 0
      %p76 = por %p74, %p75
      %p77 = scmp.ne.s32.totalorder %s69, %s71
      %p78 = scmp.eq.s32.totalorder %s19, 1
      %p79 = por %p77, %p78
      %p80 = scmp.ne.s32.totalorder %s71, %s72
      %p81 = scmp.eq.s32.totalorder %s19, 0
      %p82 = por %p80, %p81
      %p83 = scmp.ne.s32.totalorder %s71, %s72
      %p84 = scmp.eq.s32.totalorder %s20, 1
      %p85 = por %p83, %p84
      %p87 = scmp.ne.s32.totalorder %s72, %s86
      %p88 = scmp.eq.s32.totalorder %s20, 0
      %p89 = por %p87, %p88
      %s91 = sadd.s32 %s90, 1
      %p94 = scmp.eq.s32.totalorder %s14, 1
      %p95 = scmp.ne.s32.totalorder %s90, %s92
      %p96 = scmp.eq.s32.totalorder %s14, 0
      %p97 = por %p95, %p96
      %p98 = scmp.ne.s32.totalorder %s90, %s92
      %p99 = scmp.eq.s32.totalorder %s19, 1
      %p100 = por %p98, %p99
      %p101 = scmp.ne.s32.totalorder %s92, %s93
      %p102 = scmp.eq.s32.totalorder %s19, 0
      %p103 = por %p101, %p102
      %p104 = scmp.ne.s32.totalorder %s92, %s93
      %p105 = scmp.eq.s32.totalorder %s20, 1
      %p106 = por %p104, %p105
      %p108 = scmp.ne.s32.totalorder %s93, %s107
      %p109 = scmp.eq.s32.totalorder %s20, 0
      %p110 = por %p108, %p109
      %s112 = sadd.s32 %s111, 1
      %p115 = scmp.eq.s32.totalorder %s14, 1
      %p116 = scmp.ne.s32.totalorder %s111, %s113
      %p117 = scmp.eq.s32.totalorder %s14, 0
      %p118 = por %p116, %p117
      %p119 = scmp.ne.s32.totalorder %s111, %s113
      %p120 = scmp.eq.s32.totalorder %s19, 1
      %p121 = por %p119, %p120
      %p122 = scmp.ne.s32.totalorder %s113, %s114
      %p123 = scmp.eq.s32.totalorder %s19, 0
      %p124 = por %p122, %p123
      %p125 = scmp.ne.s32.totalorder %s113, %s114
      %p126 = scmp.eq.s32.totalorder %s20, 1
      %p127 = por %p125, %p126
      %p129 = scmp.ne.s32.totalorder %s114, %s128
      %p130 = scmp.eq.s32.totalorder %s20, 0
      %p131 = por %p129, %p130
      %s132 = ssub.s32 %s14, %s21
      %p133 = scmp.eq.s32.totalorder %s132, 0
      %s135 = sadd.s32 %s134, 1
      %s136 = scalar_select %p133, %s134, %s135
      %p139 = pneg %p133
      %p140 = scmp.eq.s32.totalorder %s14, 1
      %p141 = por %p139, %p140
      %p142 = scmp.ne.s32.totalorder %s134, %s137
      %p143 = scmp.eq.s32.totalorder %s14, 0
      %p144 = por %p142, %p143
      %p145 = scmp.ne.s32.totalorder %s134, %s137
      %p146 = scmp.eq.s32.totalorder %s19, 1
      %p147 = por %p145, %p146
      %p148 = scmp.ne.s32.totalorder %s137, %s138
      %p149 = scmp.eq.s32.totalorder %s19, 0
      %p150 = por %p148, %p149
      %p151 = scmp.ne.s32.totalorder %s137, %s138
      %p152 = scmp.eq.s32.totalorder %s20, 1
      %p153 = por %p151, %p152
      %p155 = scmp.ne.s32.totalorder %s138, %s154
      %p156 = scmp.eq.s32.totalorder %s20, 0
      %p157 = por %p155, %p156
      %p158 = scmp.le.s32.totalorder 1, %s14
      %p159 = scmp.lt.s32.totalorder %s14, 3
      %p160 = pnand %p158, %p159
      %p161 = pneg %p160
      // Predicated region
      $region9: #{tpu_custom_call.1} parent=5 // pred_check
        _
      $region10: #{tpu_custom_call.1} parent=5 // pred_check_branch
        %163 = sbr.rel (%p160) target = $region12
      $region11: #{tpu_custom_call.1} parent=5 // pred_region
        %s164 = ssub.s32 %s14, 1
        // Predicated region
        $region13: #{tpu_custom_call.1} parent=11 // pred_check
          %p165 = pneg %p61
        $region14: #{tpu_custom_call.1} parent=11 // pred_check_branch
          %167 = sbr.rel (%p165) target = $region16
        $region15: #{tpu_custom_call.1} parent=11 // pred_region
          _
        $region16: #{tpu_custom_call.1} parent=11 // pred_fallthru
          _
        // Predicated region
        $region17: #{tpu_custom_call.1} parent=11 // pred_check
          %p168 = pneg %p82
        $region18: #{tpu_custom_call.1} parent=11 // pred_check_branch
          %170 = sbr.rel (%p168) target = $region20
        $region19: #{tpu_custom_call.1} parent=11 // pred_region
          _
        $region20: #{tpu_custom_call.1} parent=11 // pred_fallthru
          _
        // Predicated region
        $region21: #{tpu_custom_call.1} parent=11 // pred_check
          %p171 = pneg %p103
        $region22: #{tpu_custom_call.1} parent=11 // pred_check_branch
          %173 = sbr.rel (%p171) target = $region24
        $region23: #{tpu_custom_call.1} parent=11 // pred_region
          _
        $region24: #{tpu_custom_call.1} parent=11 // pred_fallthru
          _
        // Predicated region
        $region25: #{tpu_custom_call.1} parent=11 // pred_check
          %p174 = pneg %p124
        $region26: #{tpu_custom_call.1} parent=11 // pred_check_branch
          %176 = sbr.rel (%p174) target = $region28
        $region27: #{tpu_custom_call.1} parent=11 // pred_region
          _
        $region28: #{tpu_custom_call.1} parent=11 // pred_fallthru
          _
      $region12: #{tpu_custom_call.1} parent=5 // pred_fallthru
        _
      %p177 = scmp.lt.s32.totalorder %s14, 2
      // Predicated region
      $region29: #{tpu_custom_call.1} parent=5 // pred_check
        %p178 = pneg %p177
      $region30: #{tpu_custom_call.1} parent=5 // pred_check_branch
        %180 = sbr.rel (%p178) target = $region32
      $region31: #{tpu_custom_call.1} parent=5 // pred_region
        // Predicated region
        $region33: #{tpu_custom_call.1} parent=31 // pred_check
          %p181 = pneg %p34
        $region34: #{tpu_custom_call.1} parent=31 // pred_check_branch
          %183 = sbr.rel (%p181) target = $region36
        $region35: #{tpu_custom_call.1} parent=31 // pred_region
          %p184 = scmp.lt.s32.totalorder %s14, 1
          %s185 = scalar_select %p184, %s14, 1
          %s186 = smul.addr %s185, 8
          %s187 = scalar_lea.vmem %s0, %s186
        $region36: #{tpu_custom_call.1} parent=31 // pred_fallthru
          _
      $region32: #{tpu_custom_call.1} parent=5 // pred_fallthru
        _
      %p188 = scmp.le.s32.totalorder 1, %s14
      %p189 = scmp.lt.s32.totalorder %s14, 3
      %p190 = pnand %p188, %p189
      %p191 = pneg %p190
      // Predicated region
      $region37: #{tpu_custom_call.1} parent=5 // pred_check
        _
      $region38: #{tpu_custom_call.1} parent=5 // pred_check_branch
        %193 = sbr.rel (%p190) target = $region40
      $region39: #{tpu_custom_call.1} parent=5 // pred_region
        %s194 = ssub.s32 %s14, 1
        %p195 = scmp.lt.s32.totalorder %s19, 1
        %s196 = scalar_select %p195, %s19, 1
        %s197 = smul.addr %s196, 8
        %s198 = scalar_lea.vmem %s0, %s197
        %p199 = pneg %p40
        %p200 = pneg %p37
        %p201 = pneg %p61
        %p202 = pneg %p58
        %p203 = pneg %p82
        %p204 = pneg %p79
        %p205 = pneg %p103
        %p206 = pneg %p100
        %p207 = pneg %p124
        %p208 = pneg %p121
        %p209 = pneg %p150
        %p210 = pneg %p147
        %s211 = sand.u32 %s137, 1
        %s212 = scalar_lea.sflag [#allocation3], %s211
        %s213 = sand.u32 %s137, 1
        %s214 = smul.addr %s213, 8
        %s215 = scalar_lea.vmem [#allocation2], %s214
        %p216 = scmp.lt.s32.totalorder %s19, 1
        %s217 = scalar_select %p216, %s19, 1
        %s218 = smul.addr %s217, 8
        %s219 = scalar_lea.vmem %s0, %s218
        %v220 = vld [vmem:[%s219] sm:$0xff]
        %v221 = vld [vmem:[%s1] sm:$0xff]
        %v222 = vld [vmem:[%s1 + $0x8] sm:$0xff]
        %v223 = vld [vmem:[%s1 + $0x10] sm:$0xff]
        %v224 = vld [vmem:[%s1 + $0x18] sm:$0xff]
        %vm225 = vcmask 261120
        %v227 = vsel %vm225, %v220, 0
        %229 = vmatprep.subr.mxu0 0.0
        %230 = vmatpush1.msra.mxu0 0.0
        %231 = vmatprep.subr.mxu0 0.0
        %232 = vmatpush1.msra.mxu0 0.0
        %233 = vmatprep.subr.mxu0 0.0
        %234 = vmatpush1.msra.mxu0 0.0
        %235 = vmatprep.subr.mxu0 0.0
        %236 = vmatpush1.msra.mxu0 0.0
        %237 = vmatprep.subr.mxu0 0.0
        %238 = vmatpush1.msra.mxu0 0.0
        %239 = vmatprep.subr.mxu0 0.0
        %240 = vmatpush1.msra.mxu0 0.0
        %241 = vmatprep.subr.mxu0 0.0
        %242 = vmatpush1.msra.mxu0 0.0
        %243 = vmatprep.subr.mxu0 0.0
        %244 = vmatpush1.msra.mxu0 0.0
        %245 = vmatprep.subr.mxu0 0.0
        %246 = vmatpush1.msra.mxu0 0.0
        %247 = vmatprep.subr.mxu0 0.0
        %248 = vmatpush1.msra.mxu0 0.0
        %249 = vmatprep.subr.mxu0 0.0
        %250 = vmatpush1.msra.mxu0 0.0
        %251 = vmatprep.subr.mxu0 0.0
        %252 = vmatpush1.msra.mxu0 0.0
        %253 = vmatprep.subr.mxu0 0.0
        %254 = vmatpush1.msra.mxu0 %v224
        %255 = vmatprep.subr.mxu0 0.0
        %256 = vmatpush1.msra.mxu0 %v223
        %257 = vmatprep.subr.mxu0 0.0
        %258 = vmatpush1.msra.mxu0 %v222
        %259 = vmatprep.subr.mxu0 0.0
        %260 = vmatpush1.msra.mxu0 %v221
        %261 = vmatprep.subr.mxu0 0.0
        %262 = vmatpush2.msra.mxu0 0.0
        %263 = vmatprep.subr.mxu0 0.0
        %264 = vmatpush2.msra.mxu0 0.0
        %265 = vmatprep.subr.mxu0 0.0
        %266 = vmatpush2.msra.mxu0 0.0
        %267 = vmatprep.subr.mxu0 0.0
        %268 = vmatpush2.msra.mxu0 0.0
        %269 = vmatprep.subr.mxu0 0.0
        %270 = vmatpush2.msra.mxu0 0.0
        %271 = vmatprep.subr.mxu0 0.0
        %272 = vmatpush2.msra.mxu0 0.0
        %273 = vmatprep.subr.mxu0 0.0
        %274 = vmatpush2.msra.mxu0 0.0
        %275 = vmatprep.subr.mxu0 0.0
        %276 = vmatpush2.msra.mxu0 0.0
        %277 = vmatprep.subr.mxu0 0.0
        %278 = vmatpush2.msra.mxu0 0.0
        %279 = vmatprep.subr.mxu0 0.0
        %280 = vmatpush2.msra.mxu0 0.0
        %281 = vmatprep.subr.mxu0 0.0
        %282 = vmatpush2.msra.mxu0 0.0
        %283 = vmatprep.subr.mxu0 0.0
        %284 = vmatpush2.msra.mxu0 0.0
        %285 = vmatprep.subr.mxu0 0.0
        %286 = vmatpush2.msra.mxu0 0.0
        %287 = vmatprep.subr.mxu0 0.0
        %288 = vmatpush2.msra.mxu0 0.0
        %289 = vmatprep.subr.mxu0 0.0
        %290 = vmatpush2.msra.mxu0 0.0
        %291 = vmatprep.subr.mxu0 0.0
        %292 = vmatpush2.msra.mxu0 0.0
        %293 = vmatprep.mubr.f32.mxu0 0.0
        %294 = vmatmul.mubr.f32.gmra.mxu0 %v227
        %v295 = vpop.f32.mrf.mxu0
        %v296 = vadd.f32 0.0, %v295
        %v297 = vpop.f32.mrf.mxu0
        %298 = vdwg.mxu0
        %v299 = vld [vmem:[%s2] sm:$0xff]
        %v300 = vld [vmem:[%s2 + $0x8] sm:$0xff]
        %v301 = vld [vmem:[%s2 + $0x10] sm:$0xff]
        %v302 = vld [vmem:[%s2 + $0x18] sm:$0xff]
        %303 = vmatprep.subr.mxu0 0.0
        %304 = vmatpush1.msra.mxu0 0.0
        %305 = vmatprep.subr.mxu0 0.0
        %306 = vmatpush1.msra.mxu0 0.0
        %307 = vmatprep.subr.mxu0 0.0
        %308 = vmatpush1.msra.mxu0 0.0
        %309 = vmatprep.subr.mxu0 0.0
        %310 = vmatpush1.msra.mxu0 0.0
        %311 = vmatprep.subr.mxu0 0.0
        %312 = vmatpush1.msra.mxu0 0.0
        %313 = vmatprep.subr.mxu0 0.0
        %314 = vmatpush1.msra.mxu0 0.0
        %315 = vmatprep.subr.mxu0 0.0
        %316 = vmatpush1.msra.mxu0 0.0
        %317 = vmatprep.subr.mxu0 0.0
        %318 = vmatpush1.msra.mxu0 0.0
        %319 = vmatprep.subr.mxu0 0.0
        %320 = vmatpush1.msra.mxu0 0.0
        %321 = vmatprep.subr.mxu0 0.0
        %322 = vmatpush1.msra.mxu0 0.0
        %323 = vmatprep.subr.mxu0 0.0
        %324 = vmatpush1.msra.mxu0 0.0
        %325 = vmatprep.subr.mxu0 0.0
        %326 = vmatpush1.msra.mxu0 0.0
        %327 = vmatprep.subr.mxu0 0.0
        %328 = vmatpush1.msra.mxu0 %v302
        %329 = vmatprep.subr.mxu0 0.0
        %330 = vmatpush1.msra.mxu0 %v301
        %331 = vmatprep.subr.mxu0 0.0
        %332 = vmatpush1.msra.mxu0 %v300
        %333 = vmatprep.subr.mxu0 0.0
        %334 = vmatpush1.msra.mxu0 %v299
        %335 = vmatprep.subr.mxu0 0.0
        %336 = vmatpush2.msra.mxu0 0.0
        %337 = vmatprep.subr.mxu0 0.0
        %338 = vmatpush2.msra.mxu0 0.0
        %339 = vmatprep.subr.mxu0 0.0
        %340 = vmatpush2.msra.mxu0 0.0
        %341 = vmatprep.subr.mxu0 0.0
        %342 = vmatpush2.msra.mxu0 0.0
        %343 = vmatprep.subr.mxu0 0.0
        %344 = vmatpush2.msra.mxu0 0.0
        %345 = vmatprep.subr.mxu0 0.0
        %346 = vmatpush2.msra.mxu0 0.0
        %347 = vmatprep.subr.mxu0 0.0
        %348 = vmatpush2.msra.mxu0 0.0
        %349 = vmatprep.subr.mxu0 0.0
        %350 = vmatpush2.msra.mxu0 0.0
        %351 = vmatprep.subr.mxu0 0.0
        %352 = vmatpush2.msra.mxu0 0.0
        %353 = vmatprep.subr.mxu0 0.0
        %354 = vmatpush2.msra.mxu0 0.0
        %355 = vmatprep.subr.mxu0 0.0
        %356 = vmatpush2.msra.mxu0 0.0
        %357 = vmatprep.subr.mxu0 0.0
        %358 = vmatpush2.msra.mxu0 0.0
        %359 = vmatprep.subr.mxu0 0.0
        %360 = vmatpush2.msra.mxu0 0.0
        %361 = vmatprep.subr.mxu0 0.0
        %362 = vmatpush2.msra.mxu0 0.0
        %363 = vmatprep.subr.mxu0 0.0
        %364 = vmatpush2.msra.mxu0 0.0
        %365 = vmatprep.subr.mxu0 0.0
        %366 = vmatpush2.msra.mxu0 0.0
        %367 = vmatprep.mubr.f32.mxu0 0.0
        %368 = vmatmul.mubr.f32.gmra.mxu0 %v227
        %v369 = vpop.f32.mrf.mxu0
        %v370 = vadd.f32 0.0, %v369
        %v371 = vpop.f32.mrf.mxu0
        %372 = vdwg.mxu0
        %v373 = vld [vmem:[%s3] sm:$0xff]
        %v374 = vld [vmem:[%s3 + $0x8] sm:$0xff]
        %v375 = vld [vmem:[%s3 + $0x10] sm:$0xff]
        %v376 = vld [vmem:[%s3 + $0x18] sm:$0xff]
        %377 = vmatprep.subr.mxu0 0.0
        %378 = vmatpush1.msra.mxu0 0.0
        %379 = vmatprep.subr.mxu0 0.0
        %380 = vmatpush1.msra.mxu0 0.0
        %381 = vmatprep.subr.mxu0 0.0
        %382 = vmatpush1.msra.mxu0 0.0
        %383 = vmatprep.subr.mxu0 0.0
        %384 = vmatpush1.msra.mxu0 0.0
        %385 = vmatprep.subr.mxu0 0.0
        %386 = vmatpush1.msra.mxu0 0.0
        %387 = vmatprep.subr.mxu0 0.0
        %388 = vmatpush1.msra.mxu0 0.0
        %389 = vmatprep.subr.mxu0 0.0
        %390 = vmatpush1.msra.mxu0 0.0
        %391 = vmatprep.subr.mxu0 0.0
        %392 = vmatpush1.msra.mxu0 0.0
        %393 = vmatprep.subr.mxu0 0.0
        %394 = vmatpush1.msra.mxu0 0.0
        %395 = vmatprep.subr.mxu0 0.0
        %396 = vmatpush1.msra.mxu0 0.0
        %397 = vmatprep.subr.mxu0 0.0
        %398 = vmatpush1.msra.mxu0 0.0
        %399 = vmatprep.subr.mxu0 0.0
        %400 = vmatpush1.msra.mxu0 0.0
        %401 = vmatprep.subr.mxu0 0.0
        %402 = vmatpush1.msra.mxu0 %v376
        %403 = vmatprep.subr.mxu0 0.0
        %404 = vmatpush1.msra.mxu0 %v375
        %405 = vmatprep.subr.mxu0 0.0
        %406 = vmatpush1.msra.mxu0 %v374
        %407 = vmatprep.subr.mxu0 0.0
        %408 = vmatpush1.msra.mxu0 %v373
        %409 = vmatprep.subr.mxu0 0.0
        %410 = vmatpush2.msra.mxu0 0.0
        %411 = vmatprep.subr.mxu0 0.0
        %412 = vmatpush2.msra.mxu0 0.0
        %413 = vmatprep.subr.mxu0 0.0
        %414 = vmatpush2.msra.mxu0 0.0
        %415 = vmatprep.subr.mxu0 0.0
        %416 = vmatpush2.msra.mxu0 0.0
        %417 = vmatprep.subr.mxu0 0.0
        %418 = vmatpush2.msra.mxu0 0.0
        %419 = vmatprep.subr.mxu0 0.0
        %420 = vmatpush2.msra.mxu0 0.0
        %421 = vmatprep.subr.mxu0 0.0
        %422 = vmatpush2.msra.mxu0 0.0
        %423 = vmatprep.subr.mxu0 0.0
        %424 = vmatpush2.msra.mxu0 0.0
        %425 = vmatprep.subr.mxu0 0.0
        %426 = vmatpush2.msra.mxu0 0.0
        %427 = vmatprep.subr.mxu0 0.0
        %428 = vmatpush2.msra.mxu0 0.0
        %429 = vmatprep.subr.mxu0 0.0
        %430 = vmatpush2.msra.mxu0 0.0
        %431 = vmatprep.subr.mxu0 0.0
        %432 = vmatpush2.msra.mxu0 0.0
        %433 = vmatprep.subr.mxu0 0.0
        %434 = vmatpush2.msra.mxu0 0.0
        %435 = vmatprep.subr.mxu0 0.0
        %436 = vmatpush2.msra.mxu0 0.0
        %437 = vmatprep.subr.mxu0 0.0
        %438 = vmatpush2.msra.mxu0 0.0
        %439 = vmatprep.subr.mxu0 0.0
        %440 = vmatpush2.msra.mxu0 0.0
        %441 = vmatprep.mubr.f32.mxu0 0.0
        %442 = vmatmul.mubr.f32.gmra.mxu0 %v227
        %v443 = vpop.f32.mrf.mxu0
        %v444 = vadd.f32 0.0, %v443
        %v445 = vpop.f32.mrf.mxu0
        %446 = vdwg.mxu0
        %vm447 = vcmask 130048
        %v449 = vsel %vm447, %v296, 0
        %v452 = vsel %vm447, %v370, 0
        %454 = vmatprep.subr.mxu0 0.0
        %455 = vmatpush1.xpose.msra.mxu0 0.0
        %456 = vmatprep.subr.mxu0 0.0
        %457 = vmatpush1.xpose.msra.mxu0 0.0
        %458 = vmatprep.subr.mxu0 0.0
        %459 = vmatpush1.xpose.msra.mxu0 0.0
        %460 = vmatprep.subr.mxu0 0.0
        %461 = vmatpush1.xpose.msra.mxu0 0.0
        %462 = vmatprep.subr.mxu0 0.0
        %463 = vmatpush1.xpose.msra.mxu0 0.0
        %464 = vmatprep.subr.mxu0 0.0
        %465 = vmatpush1.xpose.msra.mxu0 0.0
        %466 = vmatprep.subr.mxu0 0.0
        %467 = vmatpush1.xpose.msra.mxu0 0.0
        %468 = vmatprep.subr.mxu0 0.0
        %469 = vmatpush1.xpose.msra.mxu0 0.0
        %470 = vmatprep.subr.mxu0 0.0
        %471 = vmatpush1.xpose.msra.mxu0 0.0
        %472 = vmatprep.subr.mxu0 0.0
        %473 = vmatpush1.xpose.msra.mxu0 0.0
        %474 = vmatprep.subr.mxu0 0.0
        %475 = vmatpush1.xpose.msra.mxu0 0.0
        %476 = vmatprep.subr.mxu0 0.0
        %477 = vmatpush1.xpose.msra.mxu0 0.0
        %478 = vmatprep.subr.mxu0 0.0
        %479 = vmatpush1.xpose.msra.mxu0 0.0
        %480 = vmatprep.subr.mxu0 0.0
        %481 = vmatpush1.xpose.msra.mxu0 0.0
        %482 = vmatprep.subr.mxu0 0.0
        %483 = vmatpush1.xpose.msra.mxu0 0.0
        %484 = vmatprep.subr.mxu0 0.0
        %485 = vmatpush1.xpose.msra.mxu0 %v452
        %486 = vmatprep.subr.mxu0 0.0
        %487 = vmatpush2.xpose.msra.mxu0 0.0
        %488 = vmatprep.subr.mxu0 0.0
        %489 = vmatpush2.xpose.msra.mxu0 0.0
        %490 = vmatprep.subr.mxu0 0.0
        %491 = vmatpush2.xpose.msra.mxu0 0.0
        %492 = vmatprep.subr.mxu0 0.0
        %493 = vmatpush2.xpose.msra.mxu0 0.0
        %494 = vmatprep.subr.mxu0 0.0
        %495 = vmatpush2.xpose.msra.mxu0 0.0
        %496 = vmatprep.subr.mxu0 0.0
        %497 = vmatpush2.xpose.msra.mxu0 0.0
        %498 = vmatprep.subr.mxu0 0.0
        %499 = vmatpush2.xpose.msra.mxu0 0.0
        %500 = vmatprep.subr.mxu0 0.0
        %501 = vmatpush2.xpose.msra.mxu0 0.0
        %502 = vmatprep.subr.mxu0 0.0
        %503 = vmatpush2.xpose.msra.mxu0 0.0
        %504 = vmatprep.subr.mxu0 0.0
        %505 = vmatpush2.xpose.msra.mxu0 0.0
        %506 = vmatprep.subr.mxu0 0.0
        %507 = vmatpush2.xpose.msra.mxu0 0.0
        %508 = vmatprep.subr.mxu0 0.0
        %509 = vmatpush2.xpose.msra.mxu0 0.0
        %510 = vmatprep.subr.mxu0 0.0
        %511 = vmatpush2.xpose.msra.mxu0 0.0
        %512 = vmatprep.subr.mxu0 0.0
        %513 = vmatpush2.xpose.msra.mxu0 0.0
        %514 = vmatprep.subr.mxu0 0.0
        %515 = vmatpush2.xpose.msra.mxu0 0.0
        %516 = vmatprep.subr.mxu0 0.0
        %517 = vmatpush2.xpose.msra.mxu0 0.0
        %518 = vmatprep.mubr.f32.mxu0 0.0
        %519 = vmatmul.mubr.f32.gmra.mxu0 %v449
        %v520 = vpop.f32.mrf.mxu0
        %v521 = vadd.f32 0.0, %v520
        %v522 = vpop.f32.mrf.mxu0
        %523 = vdwg.mxu0
        %vm524 = vcmask 64512
        %v525 = vsel %vm524, %v521, -inf
        %526 = vmax.xlane.f32.xlu0 %v525
        %v527 = vpop.xlane.xlu0 %526
        %v528 = vsub.f32 %v521, %v527
        %v529 = vmul.f32 %v528, 1.442695
        %v530 = vpow.pop %v529
        %v531 = vsel %vm524, %v530, 0.0
        %532 = vadd.xlane.f32.xlu0 %v531
        %v533 = vpop.xlane.xlu0 %532
        %v535 = vsel %vm524, %v530, 0
        %537 = vmatprep.subr.mxu0 0.0
        %538 = vmatpush1.msra.mxu0 0.0
        %539 = vmatprep.subr.mxu0 0.0
        %540 = vmatpush1.msra.mxu0 0.0
        %541 = vmatprep.subr.mxu0 0.0
        %542 = vmatpush1.msra.mxu0 0.0
        %543 = vmatprep.subr.mxu0 0.0
        %544 = vmatpush1.msra.mxu0 0.0
        %545 = vmatprep.subr.mxu0 0.0
        %546 = vmatpush1.msra.mxu0 0.0
        %547 = vmatprep.subr.mxu0 0.0
        %548 = vmatpush1.msra.mxu0 0.0
        %549 = vmatprep.subr.mxu0 0.0
        %550 = vmatpush1.msra.mxu0 0.0
        %551 = vmatprep.subr.mxu0 0.0
        %552 = vmatpush1.msra.mxu0 0.0
        %553 = vmatprep.subr.mxu0 0.0
        %554 = vmatpush1.msra.mxu0 0.0
        %555 = vmatprep.subr.mxu0 0.0
        %556 = vmatpush1.msra.mxu0 0.0
        %557 = vmatprep.subr.mxu0 0.0
        %558 = vmatpush1.msra.mxu0 0.0
        %559 = vmatprep.subr.mxu0 0.0
        %560 = vmatpush1.msra.mxu0 0.0
        %561 = vmatprep.subr.mxu0 0.0
        %562 = vmatpush1.msra.mxu0 0.0
        %563 = vmatprep.subr.mxu0 0.0
        %564 = vmatpush1.msra.mxu0 0.0
        %565 = vmatprep.subr.mxu0 0.0
        %566 = vmatpush1.msra.mxu0 0.0
        %567 = vmatprep.subr.mxu0 0.0
        %568 = vmatpush1.msra.mxu0 %v444
        %569 = vmatprep.subr.mxu0 0.0
        %570 = vmatpush2.msra.mxu0 0.0
        %571 = vmatprep.subr.mxu0 0.0
        %572 = vmatpush2.msra.mxu0 0.0
        %573 = vmatprep.subr.mxu0 0.0
        %574 = vmatpush2.msra.mxu0 0.0
        %575 = vmatprep.subr.mxu0 0.0
        %576 = vmatpush2.msra.mxu0 0.0
        %577 = vmatprep.subr.mxu0 0.0
        %578 = vmatpush2.msra.mxu0 0.0
        %579 = vmatprep.subr.mxu0 0.0
        %580 = vmatpush2.msra.mxu0 0.0
        %581 = vmatprep.subr.mxu0 0.0
        %582 = vmatpush2.msra.mxu0 0.0
        %583 = vmatprep.subr.mxu0 0.0
        %584 = vmatpush2.msra.mxu0 0.0
        %585 = vmatprep.subr.mxu0 0.0
        %586 = vmatpush2.msra.mxu0 0.0
        %587 = vmatprep.subr.mxu0 0.0
        %588 = vmatpush2.msra.mxu0 0.0
        %589 = vmatprep.subr.mxu0 0.0
        %590 = vmatpush2.msra.mxu0 0.0
        %591 = vmatprep.subr.mxu0 0.0
        %592 = vmatpush2.msra.mxu0 0.0
        %593 = vmatprep.subr.mxu0 0.0
        %594 = vmatpush2.msra.mxu0 0.0
        %595 = vmatprep.subr.mxu0 0.0
        %596 = vmatpush2.msra.mxu0 0.0
        %597 = vmatprep.subr.mxu0 0.0
        %598 = vmatpush2.msra.mxu0 0.0
        %599 = vmatprep.subr.mxu0 0.0
        %600 = vmatpush2.msra.mxu0 0.0
        %601 = vmatprep.mubr.f32.mxu0 0.0
        %602 = vmatmul.mubr.f32.gmra.mxu0 %v535
        %v603 = vpop.f32.mrf.mxu0
        %v604 = vadd.f32 0.0, %v603
        %v605 = vpop.f32.mrf.mxu0
        %606 = vdwg.mxu0
        %v607 = vrcp.pop %v533
        %v608 = vmul.f32 %v604, %v607
        %609 = vrot.lane.b32.xlu0 %v296, 112
        %v610 = vpop.permute.xlu0 %609
        %611 = vrot.lane.b32.xlu0 %v370, 112
        %v612 = vpop.permute.xlu0 %611
        %v613 = vsel %vm447, %v610, 0
        %v615 = vsel %vm447, %v612, 0
        %617 = vmatprep.subr.mxu0 0.0
        %618 = vmatpush1.xpose.msra.mxu0 0.0
        %619 = vmatprep.subr.mxu0 0.0
        %620 = vmatpush1.xpose.msra.mxu0 0.0
        %621 = vmatprep.subr.mxu0 0.0
        %622 = vmatpush1.xpose.msra.mxu0 0.0
        %623 = vmatprep.subr.mxu0 0.0
        %624 = vmatpush1.xpose.msra.mxu0 0.0
        %625 = vmatprep.subr.mxu0 0.0
        %626 = vmatpush1.xpose.msra.mxu0 0.0
        %627 = vmatprep.subr.mxu0 0.0
        %628 = vmatpush1.xpose.msra.mxu0 0.0
        %629 = vmatprep.subr.mxu0 0.0
        %630 = vmatpush1.xpose.msra.mxu0 0.0
        %631 = vmatprep.subr.mxu0 0.0
        %632 = vmatpush1.xpose.msra.mxu0 0.0
        %633 = vmatprep.subr.mxu0 0.0
        %634 = vmatpush1.xpose.msra.mxu0 0.0
        %635 = vmatprep.subr.mxu0 0.0
        %636 = vmatpush1.xpose.msra.mxu0 0.0
        %637 = vmatprep.subr.mxu0 0.0
        %638 = vmatpush1.xpose.msra.mxu0 0.0
        %639 = vmatprep.subr.mxu0 0.0
        %640 = vmatpush1.xpose.msra.mxu0 0.0
        %641 = vmatprep.subr.mxu0 0.0
        %642 = vmatpush1.xpose.msra.mxu0 0.0
        %643 = vmatprep.subr.mxu0 0.0
        %644 = vmatpush1.xpose.msra.mxu0 0.0
        %645 = vmatprep.subr.mxu0 0.0
        %646 = vmatpush1.xpose.msra.mxu0 0.0
        %647 = vmatprep.subr.mxu0 0.0
        %648 = vmatpush1.xpose.msra.mxu0 %v615
        %649 = vmatprep.subr.mxu0 0.0
        %650 = vmatpush2.xpose.msra.mxu0 0.0
        %651 = vmatprep.subr.mxu0 0.0
        %652 = vmatpush2.xpose.msra.mxu0 0.0
        %653 = vmatprep.subr.mxu0 0.0
        %654 = vmatpush2.xpose.msra.mxu0 0.0
        %655 = vmatprep.subr.mxu0 0.0
        %656 = vmatpush2.xpose.msra.mxu0 0.0
        %657 = vmatprep.subr.mxu0 0.0
        %658 = vmatpush2.xpose.msra.mxu0 0.0
        %659 = vmatprep.subr.mxu0 0.0
        %660 = vmatpush2.xpose.msra.mxu0 0.0
        %661 = vmatprep.subr.mxu0 0.0
        %662 = vmatpush2.xpose.msra.mxu0 0.0
        %663 = vmatprep.subr.mxu0 0.0
        %664 = vmatpush2.xpose.msra.mxu0 0.0
        %665 = vmatprep.subr.mxu0 0.0
        %666 = vmatpush2.xpose.msra.mxu0 0.0
        %667 = vmatprep.subr.mxu0 0.0
        %668 = vmatpush2.xpose.msra.mxu0 0.0
        %669 = vmatprep.subr.mxu0 0.0
        %670 = vmatpush2.xpose.msra.mxu0 0.0
        %671 = vmatprep.subr.mxu0 0.0
        %672 = vmatpush2.xpose.msra.mxu0 0.0
        %673 = vmatprep.subr.mxu0 0.0
        %674 = vmatpush2.xpose.msra.mxu0 0.0
        %675 = vmatprep.subr.mxu0 0.0
        %676 = vmatpush2.xpose.msra.mxu0 0.0
        %677 = vmatprep.subr.mxu0 0.0
        %678 = vmatpush2.xpose.msra.mxu0 0.0
        %679 = vmatprep.subr.mxu0 0.0
        %680 = vmatpush2.xpose.msra.mxu0 0.0
        %681 = vmatprep.mubr.f32.mxu0 0.0
        %682 = vmatmul.mubr.f32.gmra.mxu0 %v613
        %v683 = vpop.f32.mrf.mxu0
        %v684 = vadd.f32 0.0, %v683
        %v685 = vpop.f32.mrf.mxu0
        %686 = vdwg.mxu0
        %v687 = vsel %vm524, %v684, -inf
        %688 = vmax.xlane.f32.xlu0 %v687
        %v689 = vpop.xlane.xlu0 %688
        %v690 = vsub.f32 %v684, %v689
        %v691 = vmul.f32 %v690, 1.442695
        %v692 = vpow.pop %v691
        %v693 = vsel %vm524, %v692, 0.0
        %694 = vadd.xlane.f32.xlu0 %v693
        %v695 = vpop.xlane.xlu0 %694
        %697 = vrot.lane.b32.xlu0 %v444, 96
        %v698 = vpop.permute.xlu0 %697
        %v701 = vsel %vm524, %v692, 0
        %703 = vmatprep.subr.mxu0 0.0
        %704 = vmatpush1.msra.mxu0 0.0
        %705 = vmatprep.subr.mxu0 0.0
        %706 = vmatpush1.msra.mxu0 0.0
        %707 = vmatprep.subr.mxu0 0.0
        %708 = vmatpush1.msra.mxu0 0.0
        %709 = vmatprep.subr.mxu0 0.0
        %710 = vmatpush1.msra.mxu0 0.0
        %711 = vmatprep.subr.mxu0 0.0
        %712 = vmatpush1.msra.mxu0 0.0
        %713 = vmatprep.subr.mxu0 0.0
        %714 = vmatpush1.msra.mxu0 0.0
        %715 = vmatprep.subr.mxu0 0.0
        %716 = vmatpush1.msra.mxu0 0.0
        %717 = vmatprep.subr.mxu0 0.0
        %718 = vmatpush1.msra.mxu0 0.0
        %719 = vmatprep.subr.mxu0 0.0
        %720 = vmatpush1.msra.mxu0 0.0
        %721 = vmatprep.subr.mxu0 0.0
        %722 = vmatpush1.msra.mxu0 0.0
        %723 = vmatprep.subr.mxu0 0.0
        %724 = vmatpush1.msra.mxu0 0.0
        %725 = vmatprep.subr.mxu0 0.0
        %726 = vmatpush1.msra.mxu0 0.0
        %727 = vmatprep.subr.mxu0 0.0
        %728 = vmatpush1.msra.mxu0 0.0
        %729 = vmatprep.subr.mxu0 0.0
        %730 = vmatpush1.msra.mxu0 0.0
        %731 = vmatprep.subr.mxu0 0.0
        %732 = vmatpush1.msra.mxu0 0.0
        %733 = vmatprep.subr.mxu0 0.0
        %734 = vmatpush1.msra.mxu0 %v698
        %735 = vmatprep.subr.mxu0 0.0
        %736 = vmatpush2.msra.mxu0 0.0
        %737 = vmatprep.subr.mxu0 0.0
        %738 = vmatpush2.msra.mxu0 0.0
        %739 = vmatprep.subr.mxu0 0.0
        %740 = vmatpush2.msra.mxu0 0.0
        %741 = vmatprep.subr.mxu0 0.0
        %742 = vmatpush2.msra.mxu0 0.0
        %743 = vmatprep.subr.mxu0 0.0
        %744 = vmatpush2.msra.mxu0 0.0
        %745 = vmatprep.subr.mxu0 0.0
        %746 = vmatpush2.msra.mxu0 0.0
        %747 = vmatprep.subr.mxu0 0.0
        %748 = vmatpush2.msra.mxu0 0.0
        %749 = vmatprep.subr.mxu0 0.0
        %750 = vmatpush2.msra.mxu0 0.0
        %751 = vmatprep.subr.mxu0 0.0
        %752 = vmatpush2.msra.mxu0 0.0
        %753 = vmatprep.subr.mxu0 0.0
        %754 = vmatpush2.msra.mxu0 0.0
        %755 = vmatprep.subr.mxu0 0.0
        %756 = vmatpush2.msra.mxu0 0.0
        %757 = vmatprep.subr.mxu0 0.0
        %758 = vmatpush2.msra.mxu0 0.0
        %759 = vmatprep.subr.mxu0 0.0
        %760 = vmatpush2.msra.mxu0 0.0
        %761 = vmatprep.subr.mxu0 0.0
        %762 = vmatpush2.msra.mxu0 0.0
        %763 = vmatprep.subr.mxu0 0.0
        %764 = vmatpush2.msra.mxu0 0.0
        %765 = vmatprep.subr.mxu0 0.0
        %766 = vmatpush2.msra.mxu0 0.0
        %767 = vmatprep.mubr.f32.mxu0 0.0
        %768 = vmatmul.mubr.f32.gmra.mxu0 %v701
        %v769 = vpop.f32.mrf.mxu0
        %v770 = vadd.f32 0.0, %v769
        %v771 = vpop.f32.mrf.mxu0
        %772 = vdwg.mxu0
        %v773 = vrcp.pop %v695
        %v774 = vmul.f32 %v770, %v773
        %775 = vrot.lane.b32.xlu0 %v296, 96
        %v776 = vpop.permute.xlu0 %775
        %777 = vrot.lane.b32.xlu0 %v370, 96
        %v778 = vpop.permute.xlu0 %777
        %v779 = vsel %vm447, %v776, 0
        %v781 = vsel %vm447, %v778, 0
        %783 = vmatprep.subr.mxu0 0.0
        %784 = vmatpush1.xpose.msra.mxu0 0.0
        %785 = vmatprep.subr.mxu0 0.0
        %786 = vmatpush1.xpose.msra.mxu0 0.0
        %787 = vmatprep.subr.mxu0 0.0
        %788 = vmatpush1.xpose.msra.mxu0 0.0
        %789 = vmatprep.subr.mxu0 0.0
        %790 = vmatpush1.xpose.msra.mxu0 0.0
        %791 = vmatprep.subr.mxu0 0.0
        %792 = vmatpush1.xpose.msra.mxu0 0.0
        %793 = vmatprep.subr.mxu0 0.0
        %794 = vmatpush1.xpose.msra.mxu0 0.0
        %795 = vmatprep.subr.mxu0 0.0
        %796 = vmatpush1.xpose.msra.mxu0 0.0
        %797 = vmatprep.subr.mxu0 0.0
        %798 = vmatpush1.xpose.msra.mxu0 0.0
        %799 = vmatprep.subr.mxu0 0.0
        %800 = vmatpush1.xpose.msra.mxu0 0.0
        %801 = vmatprep.subr.mxu0 0.0
        %802 = vmatpush1.xpose.msra.mxu0 0.0
        %803 = vmatprep.subr.mxu0 0.0
        %804 = vmatpush1.xpose.msra.mxu0 0.0
        %805 = vmatprep.subr.mxu0 0.0
        %806 = vmatpush1.xpose.msra.mxu0 0.0
        %807 = vmatprep.subr.mxu0 0.0
        %808 = vmatpush1.xpose.msra.mxu0 0.0
        %809 = vmatprep.subr.mxu0 0.0
        %810 = vmatpush1.xpose.msra.mxu0 0.0
        %811 = vmatprep.subr.mxu0 0.0
        %812 = vmatpush1.xpose.msra.mxu0 0.0
        %813 = vmatprep.subr.mxu0 0.0
        %814 = vmatpush1.xpose.msra.mxu0 %v781
        %815 = vmatprep.subr.mxu0 0.0
        %816 = vmatpush2.xpose.msra.mxu0 0.0
        %817 = vmatprep.subr.mxu0 0.0
        %818 = vmatpush2.xpose.msra.mxu0 0.0
        %819 = vmatprep.subr.mxu0 0.0
        %820 = vmatpush2.xpose.msra.mxu0 0.0
        %821 = vmatprep.subr.mxu0 0.0
        %822 = vmatpush2.xpose.msra.mxu0 0.0
        %823 = vmatprep.subr.mxu0 0.0
        %824 = vmatpush2.xpose.msra.mxu0 0.0
        %825 = vmatprep.subr.mxu0 0.0
        %826 = vmatpush2.xpose.msra.mxu0 0.0
        %827 = vmatprep.subr.mxu0 0.0
        %828 = vmatpush2.xpose.msra.mxu0 0.0
        %829 = vmatprep.subr.mxu0 0.0
        %830 = vmatpush2.xpose.msra.mxu0 0.0
        %831 = vmatprep.subr.mxu0 0.0
        %832 = vmatpush2.xpose.msra.mxu0 0.0
        %833 = vmatprep.subr.mxu0 0.0
        %834 = vmatpush2.xpose.msra.mxu0 0.0
        %835 = vmatprep.subr.mxu0 0.0
        %836 = vmatpush2.xpose.msra.mxu0 0.0
        %837 = vmatprep.subr.mxu0 0.0
        %838 = vmatpush2.xpose.msra.mxu0 0.0
        %839 = vmatprep.subr.mxu0 0.0
        %840 = vmatpush2.xpose.msra.mxu0 0.0
        %841 = vmatprep.subr.mxu0 0.0
        %842 = vmatpush2.xpose.msra.mxu0 0.0
        %843 = vmatprep.subr.mxu0 0.0
        %844 = vmatpush2.xpose.msra.mxu0 0.0
        %845 = vmatprep.subr.mxu0 0.0
        %846 = vmatpush2.xpose.msra.mxu0 0.0
        %847 = vmatprep.mubr.f32.mxu0 0.0
        %848 = vmatmul.mubr.f32.gmra.mxu0 %v779
        %v849 = vpop.f32.mrf.mxu0
        %v850 = vadd.f32 0.0, %v849
        %v851 = vpop.f32.mrf.mxu0
        %852 = vdwg.mxu0
        %v853 = vsel %vm524, %v850, -inf
        %854 = vmax.xlane.f32.xlu0 %v853
        %v855 = vpop.xlane.xlu0 %854
        %v856 = vsub.f32 %v850, %v855
        %v857 = vmul.f32 %v856, 1.442695
        %v858 = vpow.pop %v857
        %v859 = vsel %vm524, %v858, 0.0
        %860 = vadd.xlane.f32.xlu0 %v859
        %v861 = vpop.xlane.xlu0 %860
        %862 = vrot.lane.b32.xlu0 %v444, 64
        %v863 = vpop.permute.xlu0 %862
        %v866 = vsel %vm524, %v858, 0
        %868 = vmatprep.subr.mxu0 0.0
        %869 = vmatpush1.msra.mxu0 0.0
        %870 = vmatprep.subr.mxu0 0.0
        %871 = vmatpush1.msra.mxu0 0.0
        %872 = vmatprep.subr.mxu0 0.0
        %873 = vmatpush1.msra.mxu0 0.0
        %874 = vmatprep.subr.mxu0 0.0
        %875 = vmatpush1.msra.mxu0 0.0
        %876 = vmatprep.subr.mxu0 0.0
        %877 = vmatpush1.msra.mxu0 0.0
        %878 = vmatprep.subr.mxu0 0.0
        %879 = vmatpush1.msra.mxu0 0.0
        %880 = vmatprep.subr.mxu0 0.0
        %881 = vmatpush1.msra.mxu0 0.0
        %882 = vmatprep.subr.mxu0 0.0
        %883 = vmatpush1.msra.mxu0 0.0
        %884 = vmatprep.subr.mxu0 0.0
        %885 = vmatpush1.msra.mxu0 0.0
        %886 = vmatprep.subr.mxu0 0.0
        %887 = vmatpush1.msra.mxu0 0.0
        %888 = vmatprep.subr.mxu0 0.0
        %889 = vmatpush1.msra.mxu0 0.0
        %890 = vmatprep.subr.mxu0 0.0
        %891 = vmatpush1.msra.mxu0 0.0
        %892 = vmatprep.subr.mxu0 0.0
        %893 = vmatpush1.msra.mxu0 0.0
        %894 = vmatprep.subr.mxu0 0.0
        %895 = vmatpush1.msra.mxu0 0.0
        %896 = vmatprep.subr.mxu0 0.0
        %897 = vmatpush1.msra.mxu0 0.0
        %898 = vmatprep.subr.mxu0 0.0
        %899 = vmatpush1.msra.mxu0 %v863
        %900 = vmatprep.subr.mxu0 0.0
        %901 = vmatpush2.msra.mxu0 0.0
        %902 = vmatprep.subr.mxu0 0.0
        %903 = vmatpush2.msra.mxu0 0.0
        %904 = vmatprep.subr.mxu0 0.0
        %905 = vmatpush2.msra.mxu0 0.0
        %906 = vmatprep.subr.mxu0 0.0
        %907 = vmatpush2.msra.mxu0 0.0
        %908 = vmatprep.subr.mxu0 0.0
        %909 = vmatpush2.msra.mxu0 0.0
        %910 = vmatprep.subr.mxu0 0.0
        %911 = vmatpush2.msra.mxu0 0.0
        %912 = vmatprep.subr.mxu0 0.0
        %913 = vmatpush2.msra.mxu0 0.0
        %914 = vmatprep.subr.mxu0 0.0
        %915 = vmatpush2.msra.mxu0 0.0
        %916 = vmatprep.subr.mxu0 0.0
        %917 = vmatpush2.msra.mxu0 0.0
        %918 = vmatprep.subr.mxu0 0.0
        %919 = vmatpush2.msra.mxu0 0.0
        %920 = vmatprep.subr.mxu0 0.0
        %921 = vmatpush2.msra.mxu0 0.0
        %922 = vmatprep.subr.mxu0 0.0
        %923 = vmatpush2.msra.mxu0 0.0
        %924 = vmatprep.subr.mxu0 0.0
        %925 = vmatpush2.msra.mxu0 0.0
        %926 = vmatprep.subr.mxu0 0.0
        %927 = vmatpush2.msra.mxu0 0.0
        %928 = vmatprep.subr.mxu0 0.0
        %929 = vmatpush2.msra.mxu0 0.0
        %930 = vmatprep.subr.mxu0 0.0
        %931 = vmatpush2.msra.mxu0 0.0
        %932 = vmatprep.mubr.f32.mxu0 0.0
        %933 = vmatmul.mubr.f32.gmra.mxu0 %v866
        %v934 = vpop.f32.mrf.mxu0
        %v935 = vadd.f32 0.0, %v934
        %v936 = vpop.f32.mrf.mxu0
        %937 = vdwg.mxu0
        %v938 = vrcp.pop %v861
        %v939 = vmul.f32 %v935, %v938
        %940 = vrot.lane.b32.xlu0 %v296, 80
        %v941 = vpop.permute.xlu0 %940
        %942 = vrot.lane.b32.xlu0 %v370, 80
        %v943 = vpop.permute.xlu0 %942
        %v944 = vsel %vm447, %v941, 0
        %v946 = vsel %vm447, %v943, 0
        %948 = vmatprep.subr.mxu0 0.0
        %949 = vmatpush1.xpose.msra.mxu0 0.0
        %950 = vmatprep.subr.mxu0 0.0
        %951 = vmatpush1.xpose.msra.mxu0 0.0
        %952 = vmatprep.subr.mxu0 0.0
        %953 = vmatpush1.xpose.msra.mxu0 0.0
        %954 = vmatprep.subr.mxu0 0.0
        %955 = vmatpush1.xpose.msra.mxu0 0.0
        %956 = vmatprep.subr.mxu0 0.0
        %957 = vmatpush1.xpose.msra.mxu0 0.0
        %958 = vmatprep.subr.mxu0 0.0
        %959 = vmatpush1.xpose.msra.mxu0 0.0
        %960 = vmatprep.subr.mxu0 0.0
        %961 = vmatpush1.xpose.msra.mxu0 0.0
        %962 = vmatprep.subr.mxu0 0.0
        %963 = vmatpush1.xpose.msra.mxu0 0.0
        %964 = vmatprep.subr.mxu0 0.0
        %965 = vmatpush1.xpose.msra.mxu0 0.0
        %966 = vmatprep.subr.mxu0 0.0
        %967 = vmatpush1.xpose.msra.mxu0 0.0
        %968 = vmatprep.subr.mxu0 0.0
        %969 = vmatpush1.xpose.msra.mxu0 0.0
        %970 = vmatprep.subr.mxu0 0.0
        %971 = vmatpush1.xpose.msra.mxu0 0.0
        %972 = vmatprep.subr.mxu0 0.0
        %973 = vmatpush1.xpose.msra.mxu0 0.0
        %974 = vmatprep.subr.mxu0 0.0
        %975 = vmatpush1.xpose.msra.mxu0 0.0
        %976 = vmatprep.subr.mxu0 0.0
        %977 = vmatpush1.xpose.msra.mxu0 0.0
        %978 = vmatprep.subr.mxu0 0.0
        %979 = vmatpush1.xpose.msra.mxu0 %v946
        %980 = vmatprep.subr.mxu0 0.0
        %981 = vmatpush2.xpose.msra.mxu0 0.0
        %982 = vmatprep.subr.mxu0 0.0
        %983 = vmatpush2.xpose.msra.mxu0 0.0
        %984 = vmatprep.subr.mxu0 0.0
        %985 = vmatpush2.xpose.msra.mxu0 0.0
        %986 = vmatprep.subr.mxu0 0.0
        %987 = vmatpush2.xpose.msra.mxu0 0.0
        %988 = vmatprep.subr.mxu0 0.0
        %989 = vmatpush2.xpose.msra.mxu0 0.0
        %990 = vmatprep.subr.mxu0 0.0
        %991 = vmatpush2.xpose.msra.mxu0 0.0
        %992 = vmatprep.subr.mxu0 0.0
        %993 = vmatpush2.xpose.msra.mxu0 0.0
        %994 = vmatprep.subr.mxu0 0.0
        %995 = vmatpush2.xpose.msra.mxu0 0.0
        %996 = vmatprep.subr.mxu0 0.0
        %997 = vmatpush2.xpose.msra.mxu0 0.0
        %998 = vmatprep.subr.mxu0 0.0
        %999 = vmatpush2.xpose.msra.mxu0 0.0
        %1000 = vmatprep.subr.mxu0 0.0
        %1001 = vmatpush2.xpose.msra.mxu0 0.0
        %1002 = vmatprep.subr.mxu0 0.0
        %1003 = vmatpush2.xpose.msra.mxu0 0.0
        %1004 = vmatprep.subr.mxu0 0.0
        %1005 = vmatpush2.xpose.msra.mxu0 0.0
        %1006 = vmatprep.subr.mxu0 0.0
        %1007 = vmatpush2.xpose.msra.mxu0 0.0
        %1008 = vmatprep.subr.mxu0 0.0
        %1009 = vmatpush2.xpose.msra.mxu0 0.0
        %1010 = vmatprep.subr.mxu0 0.0
        %1011 = vmatpush2.xpose.msra.mxu0 0.0
        %1012 = vmatprep.mubr.f32.mxu0 0.0
        %1013 = vmatmul.mubr.f32.gmra.mxu0 %v944
        %v1014 = vpop.f32.mrf.mxu0
        %v1015 = vadd.f32 0.0, %v1014
        %v1016 = vpop.f32.mrf.mxu0
        %1017 = vdwg.mxu0
        %v1018 = vsel %vm524, %v1015, -inf
        %1019 = vmax.xlane.f32.xlu0 %v1018
        %v1020 = vpop.xlane.xlu0 %1019
        %v1021 = vsub.f32 %v1015, %v1020
        %v1022 = vmul.f32 %v1021, 1.442695
        %v1023 = vpow.pop %v1022
        %v1024 = vsel %vm524, %v1023, 0.0
        %1025 = vadd.xlane.f32.xlu0 %v1024
        %v1026 = vpop.xlane.xlu0 %1025
        %1027 = vrot.lane.b32.xlu0 %v444, 32
        %v1028 = vpop.permute.xlu0 %1027
        %v1031 = vsel %vm524, %v1023, 0
        %1033 = vmatprep.subr.mxu0 0.0
        %1034 = vmatpush1.msra.mxu0 0.0
        %1035 = vmatprep.subr.mxu0 0.0
        %1036 = vmatpush1.msra.mxu0 0.0
        %1037 = vmatprep.subr.mxu0 0.0
        %1038 = vmatpush1.msra.mxu0 0.0
        %1039 = vmatprep.subr.mxu0 0.0
        %1040 = vmatpush1.msra.mxu0 0.0
        %1041 = vmatprep.subr.mxu0 0.0
        %1042 = vmatpush1.msra.mxu0 0.0
        %1043 = vmatprep.subr.mxu0 0.0
        %1044 = vmatpush1.msra.mxu0 0.0
        %1045 = vmatprep.subr.mxu0 0.0
        %1046 = vmatpush1.msra.mxu0 0.0
        %1047 = vmatprep.subr.mxu0 0.0
        %1048 = vmatpush1.msra.mxu0 0.0
        %1049 = vmatprep.subr.mxu0 0.0
        %1050 = vmatpush1.msra.mxu0 0.0
        %1051 = vmatprep.subr.mxu0 0.0
        %1052 = vmatpush1.msra.mxu0 0.0
        %1053 = vmatprep.subr.mxu0 0.0
        %1054 = vmatpush1.msra.mxu0 0.0
        %1055 = vmatprep.subr.mxu0 0.0
        %1056 = vmatpush1.msra.mxu0 0.0
        %1057 = vmatprep.subr.mxu0 0.0
        %1058 = vmatpush1.msra.mxu0 0.0
        %1059 = vmatprep.subr.mxu0 0.0
        %1060 = vmatpush1.msra.mxu0 0.0
        %1061 = vmatprep.subr.mxu0 0.0
        %1062 = vmatpush1.msra.mxu0 0.0
        %1063 = vmatprep.subr.mxu0 0.0
        %1064 = vmatpush1.msra.mxu0 %v1028
        %1065 = vmatprep.subr.mxu0 0.0
        %1066 = vmatpush2.msra.mxu0 0.0
        %1067 = vmatprep.subr.mxu0 0.0
        %1068 = vmatpush2.msra.mxu0 0.0
        %1069 = vmatprep.subr.mxu0 0.0
        %1070 = vmatpush2.msra.mxu0 0.0
        %1071 = vmatprep.subr.mxu0 0.0
        %1072 = vmatpush2.msra.mxu0 0.0
        %1073 = vmatprep.subr.mxu0 0.0
        %1074 = vmatpush2.msra.mxu0 0.0
        %1075 = vmatprep.subr.mxu0 0.0
        %1076 = vmatpush2.msra.mxu0 0.0
        %1077 = vmatprep.subr.mxu0 0.0
        %1078 = vmatpush2.msra.mxu0 0.0
        %1079 = vmatprep.subr.mxu0 0.0
        %1080 = vmatpush2.msra.mxu0 0.0
        %1081 = vmatprep.subr.mxu0 0.0
        %1082 = vmatpush2.msra.mxu0 0.0
        %1083 = vmatprep.subr.mxu0 0.0
        %1084 = vmatpush2.msra.mxu0 0.0
        %1085 = vmatprep.subr.mxu0 0.0
        %1086 = vmatpush2.msra.mxu0 0.0
        %1087 = vmatprep.subr.mxu0 0.0
        %1088 = vmatpush2.msra.mxu0 0.0
        %1089 = vmatprep.subr.mxu0 0.0
        %1090 = vmatpush2.msra.mxu0 0.0
        %1091 = vmatprep.subr.mxu0 0.0
        %1092 = vmatpush2.msra.mxu0 0.0
        %1093 = vmatprep.subr.mxu0 0.0
        %1094 = vmatpush2.msra.mxu0 0.0
        %1095 = vmatprep.subr.mxu0 0.0
        %1096 = vmatpush2.msra.mxu0 0.0
        %1097 = vmatprep.mubr.f32.mxu0 0.0
        %1098 = vmatmul.mubr.f32.gmra.mxu0 %v1031
        %v1099 = vpop.f32.mrf.mxu0
        %v1100 = vadd.f32 0.0, %v1099
        %v1101 = vpop.f32.mrf.mxu0
        %1102 = vdwg.mxu0
        %v1103 = vrcp.pop %v1026
        %v1104 = vmul.f32 %v1100, %v1103
        %1106 = vrot.lane.b32.xlu0 %v774, 32
        %v1107 = vpop.permute.xlu0 %1106
        %1110 = vrot.lane.b32.xlu0 %v939, 64
        %v1111 = vpop.permute.xlu0 %1110
        %1114 = vrot.lane.b32.xlu0 %v1104, 96
        %v1115 = vpop.permute.xlu0 %1114
        %v1117 = vsel %vm225, %v608, %v1107
        %vm1118 = vcmask 523264
        %v1119 = vsel %vm1118, %v1117, %v1111
        %vm1120 = vcmask 785408
        %v1121 = vsel %vm1120, %v1119, %v1115
        %v1122 = vld [vmem:[%s4] sm:$0xff]
        %v1123 = vld [vmem:[%s4 + $0x8] sm:$0xff]
        %v1124 = vld [vmem:[%s4 + $0x10] sm:$0xff]
        %v1125 = vld [vmem:[%s4 + $0x18] sm:$0xff]
        %v1126 = vld [vmem:[%s4 + $0x20] sm:$0xff]
        %v1127 = vld [vmem:[%s4 + $0x28] sm:$0xff]
        %v1128 = vld [vmem:[%s4 + $0x30] sm:$0xff]
        %v1129 = vld [vmem:[%s4 + $0x38] sm:$0xff]
        %v1130 = vld [vmem:[%s4 + $0x40] sm:$0xff]
        %v1131 = vld [vmem:[%s4 + $0x48] sm:$0xff]
        %v1132 = vld [vmem:[%s4 + $0x50] sm:$0xff]
        %v1133 = vld [vmem:[%s4 + $0x58] sm:$0xff]
        %v1134 = vld [vmem:[%s4 + $0x60] sm:$0xff]
        %v1135 = vld [vmem:[%s4 + $0x68] sm:$0xff]
        %v1136 = vld [vmem:[%s4 + $0x70] sm:$0xff]
        %v1137 = vld [vmem:[%s4 + $0x78] sm:$0xff]
        %1138 = vmatprep.subr.mxu0 0.0
        %1139 = vmatpush1.msra.mxu0 %v1137
        %1140 = vmatprep.subr.mxu0 0.0
        %1141 = vmatpush1.msra.mxu0 %v1136
        %1142 = vmatprep.subr.mxu0 0.0
        %1143 = vmatpush1.msra.mxu0 %v1135
        %1144 = vmatprep.subr.mxu0 0.0
        %1145 = vmatpush1.msra.mxu0 %v1134
        %1146 = vmatprep.subr.mxu0 0.0
        %1147 = vmatpush1.msra.mxu0 %v1133
        %1148 = vmatprep.subr.mxu0 0.0
        %1149 = vmatpush1.msra.mxu0 %v1132
        %1150 = vmatprep.subr.mxu0 0.0
        %1151 = vmatpush1.msra.mxu0 %v1131
        %1152 = vmatprep.subr.mxu0 0.0
        %1153 = vmatpush1.msra.mxu0 %v1130
        %1154 = vmatprep.subr.mxu0 0.0
        %1155 = vmatpush1.msra.mxu0 %v1129
        %1156 = vmatprep.subr.mxu0 0.0
        %1157 = vmatpush1.msra.mxu0 %v1128
        %1158 = vmatprep.subr.mxu0 0.0
        %1159 = vmatpush1.msra.mxu0 %v1127
        %1160 = vmatprep.subr.mxu0 0.0
        %1161 = vmatpush1.msra.mxu0 %v1126
        %1162 = vmatprep.subr.mxu0 0.0
        %1163 = vmatpush1.msra.mxu0 %v1125
        %1164 = vmatprep.subr.mxu0 0.0
        %1165 = vmatpush1.msra.mxu0 %v1124
        %1166 = vmatprep.subr.mxu0 0.0
        %1167 = vmatpush1.msra.mxu0 %v1123
        %1168 = vmatprep.subr.mxu0 0.0
        %1169 = vmatpush1.msra.mxu0 %v1122
        %1170 = vmatprep.subr.mxu0 0.0
        %1171 = vmatpush2.msra.mxu0 0.0
        %1172 = vmatprep.subr.mxu0 0.0
        %1173 = vmatpush2.msra.mxu0 0.0
        %1174 = vmatprep.subr.mxu0 0.0
        %1175 = vmatpush2.msra.mxu0 0.0
        %1176 = vmatprep.subr.mxu0 0.0
        %1177 = vmatpush2.msra.mxu0 0.0
        %1178 = vmatprep.subr.mxu0 0.0
        %1179 = vmatpush2.msra.mxu0 0.0
        %1180 = vmatprep.subr.mxu0 0.0
        %1181 = vmatpush2.msra.mxu0 0.0
        %1182 = vmatprep.subr.mxu0 0.0
        %1183 = vmatpush2.msra.mxu0 0.0
        %1184 = vmatprep.subr.mxu0 0.0
        %1185 = vmatpush2.msra.mxu0 0.0
        %1186 = vmatprep.subr.mxu0 0.0
        %1187 = vmatpush2.msra.mxu0 0.0
        %1188 = vmatprep.subr.mxu0 0.0
        %1189 = vmatpush2.msra.mxu0 0.0
        %1190 = vmatprep.subr.mxu0 0.0
        %1191 = vmatpush2.msra.mxu0 0.0
        %1192 = vmatprep.subr.mxu0 0.0
        %1193 = vmatpush2.msra.mxu0 0.0
        %1194 = vmatprep.subr.mxu0 0.0
        %1195 = vmatpush2.msra.mxu0 0.0
        %1196 = vmatprep.subr.mxu0 0.0
        %1197 = vmatpush2.msra.mxu0 0.0
        %1198 = vmatprep.subr.mxu0 0.0
        %1199 = vmatpush2.msra.mxu0 0.0
        %1200 = vmatprep.subr.mxu0 0.0
        %1201 = vmatpush2.msra.mxu0 0.0
        %1202 = vmatprep.mubr.f32.mxu0 0.0
        %1203 = vmatmul.mubr.f32.gmra.mxu0 %v1121
        %v1204 = vpop.f32.mrf.mxu0
        %v1205 = vadd.f32 0.0, %v1204
        %v1206 = vpop.f32.mrf.mxu0
        %1207 = vdwg.mxu0
        %1208 = vst.msk [vmem:[%s215] sm:$0xff] %vm225, %v1205
        %s1209 = sand.u32 %s137, 1
        %s1210 = scalar_lea.sflag [#allocation3], %s1209
        %s1211 = sand.u32 %s137, 1
        %s1212 = smul.addr %s1211, 8
        %s1213 = scalar_lea.vmem [#allocation2], %s1212
        // Predicated region
        $region41: #{tpu_custom_call.1} parent=39 // pred_check
          %p1214 = pneg %p147
        $region42: #{tpu_custom_call.1} parent=39 // pred_check_branch
          %1216 = sbr.rel (%p1214) target = $region44
        $region43: #{tpu_custom_call.1} parent=39 // pred_region
          %s1218 = ssub.s32 128, 128
          %1219 = vsyncadd %s1210, %s1218
          %s1220 = smul.addr %s19, 128
          %s1221 = scalar_lea.hbm %s5, %s1220
          %s1223 = sshll.u32 %s1213, 4
          %s1224 = int_to_ptr.vmem [resolvable:$true] %s1223
          %1226 = dma.vmem_to_hbm [thread:$0]  %s1224, 128, %s1221, %s1210
        $region44: #{tpu_custom_call.1} parent=39 // pred_fallthru
          _
      $region40: #{tpu_custom_call.1} parent=5 // pred_fallthru
        _
      %p1227 = scmp.le.s32.totalorder 2, %s14
      // Predicated region
      $region45: #{tpu_custom_call.1} parent=5 // pred_check
        %p1228 = pneg %p1227
      $region46: #{tpu_custom_call.1} parent=5 // pred_check_branch
        %1230 = sbr.rel (%p1228) target = $region48
      $region47: #{tpu_custom_call.1} parent=5 // pred_region
        %s1231 = ssub.s32 %s14, 2
        // Predicated region
        $region49: #{tpu_custom_call.1} parent=47 // pred_check
          %p1232 = pneg %p153
        $region50: #{tpu_custom_call.1} parent=47 // pred_check_branch
          %1234 = sbr.rel (%p1232) target = $region52
        $region51: #{tpu_custom_call.1} parent=47 // pred_region
          %s1235 = sand.u32 %s138, 1
          %s1236 = scalar_lea.sflag [#allocation3], %s1235
          %s1237 = sand.u32 %s138, 1
          %s1238 = smul.addr %s1237, 8
          %s1239 = scalar_lea.vmem [#allocation2], %s1238
          %1240 = dma.done %s1236, 128
        $region52: #{tpu_custom_call.1} parent=47 // pred_fallthru
          _
      $region48: #{tpu_custom_call.1} parent=5 // pred_fallthru
        _
    $region6: #{tpu_custom_call.1} parent=1 // loop_footer
      %s18 = sadd.s32 1, %s14
    $region7: #{tpu_custom_call.1} parent=1 // loop_footer_branch
      %13 = sbr.rel target = $region3
    $region8: #{tpu_custom_call.1} parent=1 // loop_exit
      _
    %1241 = vsyncpa [#allocation3], 1
    %s1242 = scalar_lea.sflag [#allocation3], 1
    %1243 = vsyncpa %s1242, 1

</llo_original>
